<compile_context>
chip_gen: v7x
topology: tpu7x:2x2x1
jax: 0.10.0
libtpu: 0.0.40
codegen_flags: <defaults>
</compile_context>

<pallas_src>
import functools
import math

import jax
import jax.numpy as jnp
from jax.experimental import pallas as pl
from jax.experimental.pallas import tpu as pltpu


# Set to jnp.bfloat16 on v6e/v7x to double MXU throughput & effective HBM BW
# (accumulation stays f32 either way). None keeps exact f32 parity for the test.
MXU_OPERAND_DTYPE = None


def _pick_tile(dim, cap, align=1):
    """Largest tile <= cap dividing dim, preferring multiples of `align`."""
    if dim <= cap:
        return dim
    best = 1
    for t in range(cap, 0, -1):
        if dim % t == 0:
            if t % align == 0:
                return t
            if best == 1:
                best = t
    return best


# ----------------------------- tiled projection ----------------------------- #

def _linear_kernel(x_ref, w_ref, o_ref, acc_ref, *, operand_dtype):
    @pl.when(pl.program_id(2) == 0)
    def _init():
        acc_ref[...] = jnp.zeros_like(acc_ref)

    x = x_ref[...]
    w = w_ref[...]
    if operand_dtype is not None:
        x = x.astype(operand_dtype)
        w = w.astype(operand_dtype)
    # y = x @ w.T on the MXU: contract the LAST axes of both operands so the
    # wrapper never materializes w.T in HBM.
    acc_ref[...] += jax.lax.dot_general(
        x, w, dimension_numbers=(((1,), (1,)), ((), ())),
        preferred_element_type=jnp.float32)

    @pl.when(pl.program_id(2) == pl.num_programs(2) - 1)
    def _flush():
        o_ref[...] = acc_ref[...].astype(o_ref.dtype)


def linear(x2d, w, *, tm=256, tn=256, tk=512):
    """y = x2d @ w.T (nn.Linear, bias=False). x2d: (M, K); w: (N, K)."""
    M, K = x2d.shape
    N, K2 = w.shape
    assert K == K2
    tm = _pick_tile(M, tm, 8)
    tn = _pick_tile(N, tn, 128)
    tk = _pick_tile(K, tk, 128)
    itemsize = jnp.dtype(x2d.dtype).itemsize
    kernel = functools.partial(_linear_kernel, operand_dtype=MXU_OPERAND_DTYPE)
    return pl.pallas_call(
        kernel,
        out_shape=jax.ShapeDtypeStruct((M, N), x2d.dtype),
        grid=(M // tm, N // tn, K // tk),
        in_specs=[
            pl.BlockSpec((tm, tk), lambda i, j, k: (i, k)),
            pl.BlockSpec((tn, tk), lambda i, j, k: (j, k)),
        ],
        out_specs=pl.BlockSpec((tm, tn), lambda i, j, k: (i, j)),
        scratch_shapes=[pltpu.VMEM((tm, tn), jnp.float32)],
        compiler_params=pltpu.CompilerParams(
            dimension_semantics=("parallel", "parallel", "arbitrary")),
        cost_estimate=pl.CostEstimate(
            flops=2 * M * N * K,
            transcendentals=0,
            bytes_accessed=(M * K + N * K + M * N) * itemsize),
    )(x2d, w)


# ------------------------- flash-style GQA attention ------------------------ #

def _flash_gqa_kernel(q_ref, k_ref, v_ref, o_ref, m_sc, l_sc, acc_sc,
                      *, sm_scale, operand_dtype):
    g, tq, hd = q_ref.shape
    tk = k_ref.shape[0]
    qi = pl.program_id(2)
    ki = pl.program_id(3)

    @pl.when(ki == 0)
    def _init():
        m_sc[...] = jnp.full_like(m_sc, -jnp.inf)
        l_sc[...] = jnp.zeros_like(l_sc)
        acc_sc[...] = jnp.zeros_like(acc_sc)

    q_start = qi * tq
    k_start = ki * tk

    # Causal block skip: kv tiles strictly above the diagonal contribute nothing.
    @pl.when(k_start <= q_start + tq - 1)
    def _compute():
        # Fold 1/sqrt(head_dim) into q (O(tq*hd) instead of O(tq*tk)); flatten the
        # group axis into the matmul M dimension for MXU occupancy.
        q = (q_ref[...] * sm_scale).reshape(g * tq, hd)
        k = k_ref[...]
        v = v_ref[...]
        if operand_dtype is not None:
            q = q.astype(operand_dtype)
            k = k.astype(operand_dtype)
            v = v.astype(operand_dtype)

        s = jax.lax.dot_general(
            q, k, dimension_numbers=(((1,), (1,)), ((), ())),
            preferred_element_type=jnp.float32)                     # (g*tq, tk)

        # Causal mask; flattened row r corresponds to query position
        # q_start + (r % tq).
        qpos = q_start + (jax.lax.broadcasted_iota(jnp.int32, (g * tq, tk), 0) % tq)
        kpos = k_start + jax.lax.broadcasted_iota(jnp.int32, (g * tq, tk), 1)
        s = jnp.where(qpos >= kpos, s, -jnp.inf)

        # Online softmax update (all stats in f32).
        m_prev = m_sc[...]
        m_new = jnp.maximum(m_prev, jnp.max(s, axis=-1, keepdims=True))
        alpha = jnp.exp(m_prev - m_new)
        p = jnp.exp(s - m_new)
        l_sc[...] = alpha * l_sc[...] + jnp.sum(p, axis=-1, keepdims=True)
        pv = jnp.dot(p.astype(v.dtype), v, preferred_element_type=jnp.float32)
        acc_sc[...] = alpha * acc_sc[...] + pv
        m_sc[...] = m_new

    @pl.when(ki == pl.num_programs(3) - 1)
    def _finalize():
        inv_l = pl.reciprocal(l_sc[...], approx=True)   # EUP slot — ~free
        out = acc_sc[...] * inv_l
        o_ref[...] = out.reshape(g, tq, hd).astype(o_ref.dtype)


def gqa_flash_attention(q, k, v, *, block_q=256, block_k=256):
    """q: (B, Hq, S, HD); k, v: (B, NKV, S, HD) -> (B, Hq, S, HD). Causal GQA."""
    b, hq, s, hd = q.shape
    nkv = k.shape[1]
    g = hq // nkv
    tq = _pick_tile(s, block_q, 128)
    tk = _pick_tile(s, block_k, 128)
    sm_scale = 1.0 / math.sqrt(hd)
    itemsize = jnp.dtype(q.dtype).itemsize
    kernel = functools.partial(_flash_gqa_kernel, sm_scale=sm_scale,
                               operand_dtype=MXU_OPERAND_DTYPE)
    return pl.pallas_call(
        kernel,
        out_shape=jax.ShapeDtypeStruct((b, hq, s, hd), q.dtype),
        grid=(b, nkv, s // tq, s // tk),
        in_specs=[
            # q heads for kv-group j are the contiguous block [j*g, (j+1)*g).
            pl.BlockSpec((None, g, tq, hd), lambda bb, j, qi, ki: (bb, j, qi, 0)),
            pl.BlockSpec((None, None, tk, hd), lambda bb, j, qi, ki: (bb, j, ki, 0)),
            pl.BlockSpec((None, None, tk, hd), lambda bb, j, qi, ki: (bb, j, ki, 0)),
        ],
        out_specs=pl.BlockSpec((None, g, tq, hd),
                               lambda bb, j, qi, ki: (bb, j, qi, 0)),
        scratch_shapes=[
            pltpu.VMEM((g * tq, 1), jnp.float32),    # running max
            pltpu.VMEM((g * tq, 1), jnp.float32),    # running denom
            pltpu.VMEM((g * tq, hd), jnp.float32),   # output accumulator
        ],
        compiler_params=pltpu.CompilerParams(
            dimension_semantics=("parallel", "parallel", "parallel", "arbitrary")),
        cost_estimate=pl.CostEstimate(
            flops=4 * b * hq * s * s * hd,
            transcendentals=b * hq * s * s,
            bytes_accessed=(2 * b * hq * s * hd + 2 * b * nkv * s * hd) * itemsize),
    )(q, k, v)


# ---------------------------------- RoPE ------------------------------------ #

def rope_cos_sin(seq_len, head_dim, theta=10000.0):
    inv_freq = 1.0 / (
        theta ** (jnp.arange(0, head_dim, 2, dtype=jnp.float32) / head_dim))
    t = jnp.arange(seq_len, dtype=jnp.float32)
    angles = jnp.outer(t, inv_freq)          # (S, head_dim/2)
    return jnp.cos(angles), jnp.sin(angles)


def apply_rope(x, cos, sin):
    # x: (B, S, H, HD); rotation on interleaved (even, odd) pairs (Llama-style).
    b, s, h, hd = x.shape
    xr = x.reshape(b, s, h, hd // 2, 2)
    x0, x1 = xr[..., 0], xr[..., 1]
    c = cos[None, :, None, :]
    sn = sin[None, :, None, :]
    o0 = x0 * c - x1 * sn
    o1 = x0 * sn + x1 * c
    return jnp.stack([o0, o1], axis=-1).reshape(b, s, h, hd)


# ------------------------------- full forward -------------------------------- #

def self_attention_gq(x, wq, wk, wv, wo, num_heads_q, num_heads_kv):
    b, s, d = x.shape
    hd = d // num_heads_q
    dq = num_heads_q * hd
    dk = num_heads_kv * hd

    x2 = x.reshape(b * s, d)
    # Fused QKV projection: x is read from HBM once for all three projections.
    w_qkv = jnp.concatenate([wq, wk, wv], axis=0)          # (dq + 2*dk, d)
    qkv = linear(x2, w_qkv)                                # (b*s, dq + 2*dk)
    q = qkv[:, :dq].reshape(b, s, num_heads_q, hd)
    k = qkv[:, dq:dq + dk].reshape(b, s, num_heads_kv, hd)
    v = qkv[:, dq + dk:].reshape(b, s, num_heads_kv, hd)

    # TODO(synk): fuse RoPE into the attention kernel (pltpu.roll formulation) to
    # remove one HBM round trip on q/k; kept as XLA elementwise glue here.
    cos, sin = rope_cos_sin(s, hd)
    q = apply_rope(q, cos, sin)
    k = apply_rope(k, cos, sin)

    q = q.transpose(0, 2, 1, 3)    # (b, hq, s, hd); heads ordered kv*G + g
    k = k.transpose(0, 2, 1, 3)    # (b, nkv, s, hd)
    v = v.transpose(0, 2, 1, 3)    # (b, nkv, s, hd)

    attn = gqa_flash_attention(q, k, v)                    # (b, hq, s, hd)
    out = attn.transpose(0, 2, 1, 3).reshape(b * s, d)
    return linear(out, wo).reshape(b, s, d)


# ----------------------------- pure-JAX reference ----------------------------- #

def _reference(x, wq, wk, wv, wo, num_heads_q, num_heads_kv):
    b, s, d = x.shape
    hd = d // num_heads_q
    g = num_heads_q // num_heads_kv
    q = (x @ wq.T).reshape(b, s, num_heads_q, hd)
    k = (x @ wk.T).reshape(b, s, num_heads_kv, hd)
    v = (x @ wv.T).reshape(b, s, num_heads_kv, hd)
    cos, sin = rope_cos_sin(s, hd)
    q = apply_rope(q, cos, sin)
    k = apply_rope(k, cos, sin)
    q = q.transpose(0, 2, 1, 3).reshape(b, num_heads_kv, g, s, hd)
    k = k.transpose(0, 2, 1, 3)
    v = v.transpose(0, 2, 1, 3)
    scores = jnp.einsum("bngqd,bnkd->bngqk", q, k) / math.sqrt(hd)
    mask = jnp.tril(jnp.ones((s, s), dtype=bool))
    scores = jnp.where(mask[None, None, None], scores, -jnp.inf)
    w = jax.nn.softmax(scores, axis=-1)
    o = jnp.einsum("bngqk,bnkd->bngqd", w, v)
    o = o.reshape(b, num_heads_q, s, hd).transpose(0, 2, 1, 3).reshape(b, s, d)
    return o @ wo.T


# ----------------------------------- main ------------------------------------ #

if __name__ == "__main__":
    B, S, D = 2, 8, 32
    NUM_HEADS_Q, NUM_HEADS_KV = 4, 2
    HD = D // NUM_HEADS_Q            # 8
    assert NUM_HEADS_Q % NUM_HEADS_KV == 0

    key = jax.random.PRNGKey(0)
    kx, kq, kk, kv, ko = jax.random.split(key, 5)

    x = jax.random.normal(kx, (B, S, D), dtype=jnp.float32)
    # nn.Linear weight shapes: (out_features, in_features), bias=False
    wq = jax.random.normal(kq, (NUM_HEADS_Q * HD, D), dtype=jnp.float32) * 0.05
    wk = jax.random.normal(kk, (NUM_HEADS_KV * HD, D), dtype=jnp.float32) * 0.05
    wv = jax.random.normal(kv, (NUM_HEADS_KV * HD, D), dtype=jnp.float32) * 0.05
    wo = jax.random.normal(ko, (D, NUM_HEADS_Q * HD), dtype=jnp.float32) * 0.05

    out = self_attention_gq(x, wq, wk, wv, wo, NUM_HEADS_Q, NUM_HEADS_KV)
    jax.block_until_ready(out)
    assert out.shape == (B, S, D)

    ref = _reference(x, wq, wk, wv, wo, NUM_HEADS_Q, NUM_HEADS_KV)
    assert jnp.allclose(out, ref, rtol=2e-2, atol=2e-2), float(
        jnp.max(jnp.abs(out - ref)))
    print("KERNEL_OK")
</pallas_src>

<mosaic_0001>
module attributes {stable_mosaic.version = 11 : i64} {
  func.func @_linear_kernel(%arg0: i32, %arg1: i32, %arg2: i32, %arg3: memref<16x32xf32, #tpu.memory_space<vmem>>, %arg4: memref<64x32xf32, #tpu.memory_space<vmem>>, %arg5: memref<16x64xf32, #tpu.memory_space<vmem>>, %arg6: memref<16x64xf32, #tpu.memory_space<vmem>>) attributes {dimension_semantics = [#tpu.dimension_semantics<parallel>, #tpu.dimension_semantics<parallel>, #tpu.dimension_semantics<arbitrary>], iteration_bounds = array<i64: 1, 1, 1>, scalar_prefetch = 0 : i64, scratch_operands = 1 : i64, tpu.core_type = #tpu.core_type<tc>, window_params = [{transform_indices = @transform_0, window_bounds = array<i64: 16, 32>}, {transform_indices = @transform_1, window_bounds = array<i64: 64, 32>}, {transform_indices = @transform_2, window_bounds = array<i64: 16, 64>}]} {
    %c0_i32 = arith.constant 0 : i32
    %0 = arith.cmpi eq, %arg2, %c0_i32 : i32
    %1 = arith.extui %0 : i1 to i32
    %c0_i32_0 = arith.constant 0 : i32
    %2 = arith.cmpi ne, %1, %c0_i32_0 : i32
    scf.if %2 {
      %cst_10 = arith.constant 0.000000e+00 : f32
      %12 = vector.broadcast %cst_10 : f32 to vector<16x64xf32>
      %c0_11 = arith.constant 0 : index
      %c0_12 = arith.constant 0 : index
      %13 = vector.load %arg6[%c0_11, %c0_12] : memref<16x64xf32, #tpu.memory_space<vmem>>, vector<16x64xf32>
      tpu.vector_store %arg6[%c0_11, %c0_12], %12 {strides = array<i32>} : memref<16x64xf32, #tpu.memory_space<vmem>>, vector<16x64xf32>,
    } else {
    }
    %c0 = arith.constant 0 : index
    %c0_1 = arith.constant 0 : index
    %3 = vector.load %arg3[%c0, %c0_1] : memref<16x32xf32, #tpu.memory_space<vmem>>, vector<16x32xf32>
    %c0_2 = arith.constant 0 : index
    %c0_3 = arith.constant 0 : index
    %4 = vector.load %arg4[%c0_2, %c0_3] : memref<64x32xf32, #tpu.memory_space<vmem>>, vector<64x32xf32>
    %c0_4 = arith.constant 0 : index
    %c0_5 = arith.constant 0 : index
    %5 = vector.load %arg6[%c0_4, %c0_5] : memref<16x64xf32, #tpu.memory_space<vmem>>, vector<16x64xf32>
    %cst = arith.constant dense<0.000000e+00> : vector<16x64xf32>
    %6 = tpu.matmul %3, %4, %cst {dimension_numbers = #tpu.dot_dimension_numbers<[1], [1], [0], [0], [0, 0, 1, 0], [], []>} : vector<16x32xf32>, vector<64x32xf32>, vector<16x64xf32> -> vector<16x64xf32>
    %7 = arith.addf %5, %6 : vector<16x64xf32>
    %c0_6 = arith.constant 0 : index
    %c0_7 = arith.constant 0 : index
    %8 = vector.load %arg6[%c0_6, %c0_7] : memref<16x64xf32, #tpu.memory_space<vmem>>, vector<16x64xf32>
    tpu.vector_store %arg6[%c0_6, %c0_7], %7 {strides = array<i32>} : memref<16x64xf32, #tpu.memory_space<vmem>>, vector<16x64xf32>,
    %c0_i32_8 = arith.constant 0 : i32
    %9 = arith.cmpi eq, %arg2, %c0_i32_8 : i32
    %10 = arith.extui %9 : i1 to i32
    %c0_i32_9 = arith.constant 0 : i32
    %11 = arith.cmpi ne, %10, %c0_i32_9 : i32
    scf.if %11 {
      %c0_10 = arith.constant 0 : index
      %c0_11 = arith.constant 0 : index
      %12 = vector.load %arg6[%c0_10, %c0_11] : memref<16x64xf32, #tpu.memory_space<vmem>>, vector<16x64xf32>
      %c0_12 = arith.constant 0 : index
      %c0_13 = arith.constant 0 : index
      %13 = vector.load %arg5[%c0_12, %c0_13] : memref<16x64xf32, #tpu.memory_space<vmem>>, vector<16x64xf32>
      tpu.vector_store %arg5[%c0_12, %c0_13], %12 {strides = array<i32>} : memref<16x64xf32, #tpu.memory_space<vmem>>, vector<16x64xf32>,
    } else {
    }
    return
  }
  func.func @transform_0(%arg0: i32, %arg1: i32, %arg2: i32) -> (i32, i32) {
    %c0_i32 = arith.constant 0 : i32
    return %arg0, %arg2 : i32, i32
  }
  func.func @transform_1(%arg0: i32, %arg1: i32, %arg2: i32) -> (i32, i32) {
    %c0_i32 = arith.constant 0 : i32
    return %arg1, %arg2 : i32, i32
  }
  func.func @transform_2(%arg0: i32, %arg1: i32, %arg2: i32) -> (i32, i32) {
    %c0_i32 = arith.constant 0 : i32
    return %arg0, %arg1 : i32, i32
  }
}

</mosaic_0001>

<llo_original>
// kernel: tpu_custom_call.1
$region0: #{tpu_custom_call.1}
  #allocation0 [shape = 'u32[]', space=smem, size = 0x4, offset = 0x4, fixed_abs, tag = 'smem constant byte address 0x4 - core index']
  #allocation1 [shape = 'u32[144,128]{1,0:T(1,128)}', space=vmem, size = 0x12000, scoped, tag = 'internal scratch']
  #allocation2 [shape = 'f32[16,64]{1,0:T(8,128)}', space=vmem, size = 0x2000, scoped, tag = 'scratch operand']
  %s0 = inlined_call_operand.vmem [shape: f32[16,32], index: 0, kind: input, shape index: {}]
  %s1 = inlined_call_operand.vmem [shape: f32[64,32], index: 1, kind: input, shape index: {}]
  %s2 = inlined_call_operand.hbm [shape: f32[16,64], index: 2, kind: output, shape index: {}]
  %s3 = sld [smem:[#allocation0]]
  $region26: #{tpu_custom_call.1} parent=0
    _
  %s5 = ssub.s32 1, %s3
  %s6 = scalar_select 0, %s5, %s3
  $region1: #{tpu_custom_call.1} parent=0
    #allocation3 [shape = 'u8[8192]{0}', space=vmem, size = 0x2000, scoped, tag = 'output window, operand 0, single buffered']
    #allocation4 [shape = 's32[1]{0}', space=sflag, size = 0x4, scoped, tag = 'scoped memory for tpu_custom_call.1']
    %7 = vsyncpa [#allocation4], 0
    // Predicated region
    $region2: #{tpu_custom_call.1} parent=1 // pred_check
      _
    $region3: #{tpu_custom_call.1} parent=1 // pred_check_branch
      %9 = sbr.rel (0) target = $region5
    $region4: #{tpu_custom_call.1} parent=1 // pred_region
      _
    $region5: #{tpu_custom_call.1} parent=1 // pred_fallthru
      _
    // Predicated region
    $region6: #{tpu_custom_call.1} parent=1 // pred_check
      _
    $region7: #{tpu_custom_call.1} parent=1 // pred_check_branch
      %11 = sbr.rel (0) target = $region9
    $region8: #{tpu_custom_call.1} parent=1 // pred_region
      _
    $region9: #{tpu_custom_call.1} parent=1 // pred_fallthru
      _
    %p12 = scmp.eq.s32.totalorder 0, 0
    // Predicated region
    $region10: #{tpu_custom_call.1} parent=1 // pred_check
      %p13 = pneg %p12
    $region11: #{tpu_custom_call.1} parent=1 // pred_check_branch
      %15 = sbr.rel (%p13) target = $region13
    $region12: #{tpu_custom_call.1} parent=1 // pred_region
      %vm16 = vcmask 523264
      %17 = vst.msk [vmem:[#allocation2] sm:$0xff] %vm16, 0.0
      %18 = vst.msk [vmem:[#allocation2 + $0x8] sm:$0xff] %vm16, 0.0
    $region13: #{tpu_custom_call.1} parent=1 // pred_fallthru
      _
    %v19 = vld [vmem:[%s0] sm:$0xff]
    %v20 = vld [vmem:[%s0 + $0x8] sm:$0xff]
    %v21 = vld [vmem:[%s1] sm:$0xff]
    %v22 = vld [vmem:[%s1 + $0x8] sm:$0xff]
    %v23 = vld [vmem:[%s1 + $0x10] sm:$0xff]
    %v24 = vld [vmem:[%s1 + $0x18] sm:$0xff]
    %v25 = vld [vmem:[%s1 + $0x20] sm:$0xff]
    %v26 = vld [vmem:[%s1 + $0x28] sm:$0xff]
    %v27 = vld [vmem:[%s1 + $0x30] sm:$0xff]
    %v28 = vld [vmem:[%s1 + $0x38] sm:$0xff]
    %v29 = vld [vmem:[#allocation2] sm:$0xff]
    %v30 = vld [vmem:[#allocation2 + $0x8] sm:$0xff]
    %vm31 = vcmask 261120
    %v33 = vsel %vm31, %v19, 0
    %v36 = vsel %vm31, %v20, 0
    %v39 = vsel %vm31, %v21, 0
    %v42 = vsel %vm31, %v22, 0
    %v45 = vsel %vm31, %v23, 0
    %v48 = vsel %vm31, %v24, 0
    %v51 = vsel %vm31, %v25, 0
    %v54 = vsel %vm31, %v26, 0
    %v57 = vsel %vm31, %v27, 0
    %v60 = vsel %vm31, %v28, 0
    %62 = vmatprep.subr.mxu0 0.0
    %63 = vmatpush1.xpose.msra.mxu0 %v39
    %64 = vmatprep.subr.mxu0 0.0
    %65 = vmatpush1.xpose.msra.mxu0 %v42
    %66 = vmatprep.subr.mxu0 0.0
    %67 = vmatpush1.xpose.msra.mxu0 %v45
    %68 = vmatprep.subr.mxu0 0.0
    %69 = vmatpush1.xpose.msra.mxu0 %v48
    %70 = vmatprep.subr.mxu0 0.0
    %71 = vmatpush1.xpose.msra.mxu0 %v51
    %72 = vmatprep.subr.mxu0 0.0
    %73 = vmatpush1.xpose.msra.mxu0 %v54
    %74 = vmatprep.subr.mxu0 0.0
    %75 = vmatpush1.xpose.msra.mxu0 %v57
    %76 = vmatprep.subr.mxu0 0.0
    %77 = vmatpush1.xpose.msra.mxu0 %v60
    %78 = vmatprep.subr.mxu0 0.0
    %79 = vmatpush1.xpose.msra.mxu0 0.0
    %80 = vmatprep.subr.mxu0 0.0
    %81 = vmatpush1.xpose.msra.mxu0 0.0
    %82 = vmatprep.subr.mxu0 0.0
    %83 = vmatpush1.xpose.msra.mxu0 0.0
    %84 = vmatprep.subr.mxu0 0.0
    %85 = vmatpush1.xpose.msra.mxu0 0.0
    %86 = vmatprep.subr.mxu0 0.0
    %87 = vmatpush1.xpose.msra.mxu0 0.0
    %88 = vmatprep.subr.mxu0 0.0
    %89 = vmatpush1.xpose.msra.mxu0 0.0
    %90 = vmatprep.subr.mxu0 0.0
    %91 = vmatpush1.xpose.msra.mxu0 0.0
    %92 = vmatprep.subr.mxu0 0.0
    %93 = vmatpush1.xpose.msra.mxu0 0.0
    %94 = vmatprep.subr.mxu0 0.0
    %95 = vmatpush1.xpose.msra.mxu0 0.0
    %96 = vmatprep.subr.mxu0 0.0
    %97 = vmatpush1.xpose.msra.mxu0 0.0
    %98 = vmatprep.subr.mxu0 0.0
    %99 = vmatpush1.xpose.msra.mxu0 0.0
    %100 = vmatprep.subr.mxu0 0.0
    %101 = vmatpush1.xpose.msra.mxu0 0.0
    %102 = vmatprep.subr.mxu0 0.0
    %103 = vmatpush1.xpose.msra.mxu0 0.0
    %104 = vmatprep.subr.mxu0 0.0
    %105 = vmatpush1.xpose.msra.mxu0 0.0
    %106 = vmatprep.subr.mxu0 0.0
    %107 = vmatpush1.xpose.msra.mxu0 0.0
    %108 = vmatprep.subr.mxu0 0.0
    %109 = vmatpush1.xpose.msra.mxu0 0.0
    %110 = vmatprep.subr.mxu0 0.0
    %111 = vmatpush1.xpose.msra.mxu0 0.0
    %112 = vmatprep.subr.mxu0 0.0
    %113 = vmatpush1.xpose.msra.mxu0 0.0
    %114 = vmatprep.subr.mxu0 0.0
    %115 = vmatpush1.xpose.msra.mxu0 0.0
    %116 = vmatprep.subr.mxu0 0.0
    %117 = vmatpush1.xpose.msra.mxu0 0.0
    %118 = vmatprep.subr.mxu0 0.0
    %119 = vmatpush1.xpose.msra.mxu0 0.0
    %120 = vmatprep.subr.mxu0 0.0
    %121 = vmatpush1.xpose.msra.mxu0 0.0
    %122 = vmatprep.subr.mxu0 0.0
    %123 = vmatpush1.xpose.msra.mxu0 0.0
    %124 = vmatprep.subr.mxu0 0.0
    %125 = vmatpush1.xpose.msra.mxu0 0.0
    %126 = vmatprep.mubr.f32.mxu0 0.0
    %127 = vmatmul.mubr.f32.gmra.mrb[0].mxu0 %v33
    %v128 = vpop.f32.mrb[0].mxu0
    %v129 = vadd.f32 0.0, %v128
    %v130 = vpop.f32.mrb[0].mxu0
    %131 = vmatprep.mubr.f32.mxu0 0.0
    %132 = vmatmul.mubr.f32.gmra.mrb[0].mxu0 %v36
    %v133 = vpop.f32.mrb[0].mxu0
    %v134 = vadd.f32 0.0, %v133
    %v135 = vpop.f32.mrb[0].mxu0
    %136 = vdwg.mxu0
    %v137 = vadd.f32 %v29, %v129
    %v138 = vadd.f32 %v30, %v134
    %vm139 = vcmask 523264
    %140 = vst.msk [vmem:[#allocation2] sm:$0xff] %vm139, %v137
    %141 = vst.msk [vmem:[#allocation2 + $0x8] sm:$0xff] %vm139, %v138
    // Predicated region
    $region14: #{tpu_custom_call.1} parent=1 // pred_check
      %p142 = pneg %p12
    $region15: #{tpu_custom_call.1} parent=1 // pred_check_branch
      %144 = sbr.rel (%p142) target = $region17
    $region16: #{tpu_custom_call.1} parent=1 // pred_region
      %v145 = vld [vmem:[#allocation2] sm:$0xff]
      %v146 = vld [vmem:[#allocation2 + $0x8] sm:$0xff]
      %147 = vst.msk [vmem:[#allocation3] sm:$0xff] %vm139, %v145
      %148 = vst.msk [vmem:[#allocation3 + $0x8] sm:$0xff] %vm139, %v146
    $region17: #{tpu_custom_call.1} parent=1 // pred_fallthru
      _
    // Predicated region
    $region18: #{tpu_custom_call.1} parent=1 // pred_check
      _
    $region19: #{tpu_custom_call.1} parent=1 // pred_check_branch
      %150 = sbr.rel (0) target = $region21
    $region20: #{tpu_custom_call.1} parent=1 // pred_region
      %s152 = ssub.s32 256, 256
      %153 = vsyncadd [#allocation4], %s152
      %s154 = sshll.u32 [#allocation3], 4
      %s155 = int_to_ptr.vmem [resolvable:$true] %s154
      %160 = dma.vmem_to_hbm [thread:$0]  %s155, 256, %s2, [#allocation4], 128, 128, 8
    $region21: #{tpu_custom_call.1} parent=1 // pred_fallthru
      _
    // Predicated region
    $region22: #{tpu_custom_call.1} parent=1 // pred_check
      _
    $region23: #{tpu_custom_call.1} parent=1 // pred_check_branch
      %162 = sbr.rel (0) target = $region25
    $region24: #{tpu_custom_call.1} parent=1 // pred_region
      %163 = dma.done [#allocation4], 256
    $region25: #{tpu_custom_call.1} parent=1 // pred_fallthru
      _
    %164 = vsyncpa [#allocation4], 1

</llo_original>
